<compile_context>
chip_gen: v7x
topology: tpu7x:2x2x1
jax: 0.10.0
libtpu: 0.0.40
codegen_flags: <defaults>
</compile_context>

<pallas_src>
import math

import jax
import jax.numpy as jnp
from jax.experimental import pallas as pl
from jax.experimental.pallas import tpu as pltpu


IN_DIM = 4        # 3 + 1 after the concat
K_PAD = 8         # layer-1 contraction dim padded to 8 for the MXU
HID = 256
OUT_LANES = 128   # lane-padded output width (z = lane 0, rho-logit = lane 1)


def _round_up(x, m):
    return ((x + m - 1) // m) * m


def _net_z_kernel(x_ref, w1_ref, b1_ref, w2_ref, b2_ref, wh_ref, bh_ref, o_ref):
    # x:(tm,8) f32 (cols 4..7 zero)   w1:(8,256) f32    b1:(1,256) f32
    # w2:(256,256) bf16               b2:(1,256) f32
    # wh:(256,128) bf16 (col 0 = z, col 1 = rho-logit, rest zero)  bh:(1,128) f32
    # o:(tm,128) bf16

    # ---- layer 1: tiny K=8 f32 matmul on the MXU (keeps VPU/XLU slots free) ----
    h1 = jnp.dot(x_ref[...], w1_ref[...],
                 preferred_element_type=jnp.float32) + b1_ref[...]
    h1 = jnp.maximum(h1, 0.0)                                   # (tm, 256) f32

    # ---- layer 2: dominant 256x256 matmul, bf16 operands / f32 accumulate ----
    h2 = jnp.dot(h1.astype(jnp.bfloat16), w2_ref[...],
                 preferred_element_type=jnp.float32) + b2_ref[...]
    h2 = jnp.maximum(h2, 0.0)                                   # (tm, 256) f32

    # ---- fused heads -> lane-dense (tm, 128) tile, stored as bf16 ----
    # sigmoid on the rho lane is applied in the wrapper on the (N,1) slice.
    out = jnp.dot(h2.astype(jnp.bfloat16), wh_ref[...],
                  preferred_element_type=jnp.float32) + bh_ref[...]
    o_ref[...] = out.astype(o_ref.dtype)


def net_z_forward(h, z, params, *, tm=1024):
    """h: (N, 3), z: (N, 1) float32.  Returns (z_out (N,1), rho_out (N,1)) f32."""
    x = jnp.concatenate([h, z], axis=1).astype(jnp.float32)    # (N, 4)
    N = x.shape[0]

    # Tile size: large to amortize per-step pipeline overhead, but capped at
    # ~ceil(N/2) so the grid always has >= 2 steps (both v7x TensorCores busy).
    # Multiple of 16 so the bf16 output tile is sublane-aligned.
    tm = max(16, _round_up(tm, 16))
    tm_eff = min(tm, _round_up(pl.cdiv(N, 2), 16))
    n_pad = _round_up(N, tm_eff)

    # One pad handles both the row remainder and the K: 4 -> 8 zero-extension.
    x = jnp.pad(x, ((0, n_pad - N), (0, K_PAD - IN_DIM)))

    # weights: (in, out) layout; big operands cast to bf16 once; heads fused+padded
    w1 = jnp.pad(params["w1"].astype(jnp.float32),
                 ((0, K_PAD - IN_DIM), (0, 0)))                 # (8, 256)
    b1 = params["b1"].astype(jnp.float32)                       # (1, 256)
    w2 = params["w2"].astype(jnp.bfloat16)                      # (256, 256)
    b2 = params["b2"].astype(jnp.float32)                       # (1, 256)
    wh = jnp.concatenate([params["wz"], params["wrho"]], axis=1)        # (256, 2)
    wh = jnp.pad(wh, ((0, 0), (0, OUT_LANES - 2))).astype(jnp.bfloat16)
    bh = jnp.concatenate([params["bz"], params["brho"]], axis=1)        # (1, 2)
    bh = jnp.pad(bh, ((0, 0), (0, OUT_LANES - 2))).astype(jnp.float32)

    grid = (n_pad // tm_eff,)
    full = lambda i: (0, 0)   # weights/biases: same full block every grid step

    out = pl.pallas_call(
        _net_z_kernel,
        out_shape=jax.ShapeDtypeStruct((n_pad, OUT_LANES), jnp.bfloat16),
        grid_spec=pltpu.PrefetchScalarGridSpec(
            num_scalar_prefetch=0,
            grid=grid,
            in_specs=[
                pl.BlockSpec((tm_eff, K_PAD), lambda i: (i, 0)),    # x tile
                pl.BlockSpec((K_PAD, HID), full),                   # W1 (padded)
                pl.BlockSpec((1, HID), full),                       # b1
                pl.BlockSpec((HID, HID), full),                     # W2 (bf16)
                pl.BlockSpec((1, HID), full),                       # b2
                pl.BlockSpec((HID, OUT_LANES), full),               # fused heads W
                pl.BlockSpec((1, OUT_LANES), full),                 # fused heads b
            ],
            out_specs=pl.BlockSpec((tm_eff, OUT_LANES), lambda i: (i, 0)),
        ),
        compiler_params=pltpu.CompilerParams(
            dimension_semantics=("parallel",),
            # ~a few MiB used at tm<=2048; 32 MiB leaves headroom on all gens
            # (incl. v7x's 64 MiB physical VMEM).
            vmem_limit_bytes=32 * 1024 * 1024,
        ),
    )(x, w1, b1, w2, b2, wh, bh)

    z_out = out[:N, 0:1].astype(jnp.float32)
    rho_out = jax.nn.sigmoid(out[:N, 1:2].astype(jnp.float32))
    return z_out, rho_out


def init_params(key):
    """PyTorch nn.Linear default init: uniform(+-1/sqrt(fan_in)) for W and b."""
    def linear(k, fan_in, fan_out):
        kw, kb = jax.random.split(k)
        bound = 1.0 / math.sqrt(fan_in)
        w = jax.random.uniform(kw, (fan_in, fan_out), jnp.float32, -bound, bound)
        b = jax.random.uniform(kb, (1, fan_out), jnp.float32, -bound, bound)
        return w, b

    k1, k2, k3, k4 = jax.random.split(key, 4)
    w1, b1 = linear(k1, IN_DIM, HID)
    w2, b2 = linear(k2, HID, HID)
    wz, bz = linear(k3, HID, 1)
    wrho, brho = linear(k4, HID, 1)
    return dict(w1=w1, b1=b1, w2=w2, b2=b2, wz=wz, bz=bz, wrho=wrho, brho=brho)


def net_z_reference(h, z, p):
    x = jnp.concatenate([h, z], axis=1)
    h1 = jnp.maximum(x @ p["w1"] + p["b1"], 0.0)
    h2 = jnp.maximum(h1 @ p["w2"] + p["b2"], 0.0)
    z_out = h2 @ p["wz"] + p["bz"]
    rho_out = 1.0 / (1.0 + jnp.exp(-(h2 @ p["wrho"] + p["brho"])))
    return z_out, rho_out


if __name__ == "__main__":
    key = jax.random.PRNGKey(0)
    kp, kh, kz = jax.random.split(key, 3)

    params = init_params(kp)
    N = 256
    h = jax.random.normal(kh, (N, 3), jnp.float32)
    z = jax.random.normal(kz, (N, 1), jnp.float32)

    # Default tm=1024 is capped to ceil(N/2)=128 -> grid of 2 parallel steps
    # even at this small demo batch (keeps both v7x cores busy).
    z_out, rho_out = net_z_forward(h, z, params)
    z_out = jax.block_until_ready(z_out)
    rho_out = jax.block_until_ready(rho_out)

    z_ref, rho_ref = net_z_reference(h, z, params)
    assert z_out.shape == (N, 1) and rho_out.shape == (N, 1), (z_out.shape, rho_out.shape)
    # bf16 matmul operands + bf16 output store (f32 accumulate) -> loose tolerance
    assert jnp.allclose(z_out, z_ref, atol=5e-2, rtol=5e-2), "z head mismatch"
    assert jnp.allclose(rho_out, rho_ref, atol=5e-2, rtol=5e-2), "rho head mismatch"

    print("KERNEL_OK")
</pallas_src>

<mosaic_0001>
module attributes {stable_mosaic.version = 11 : i64} {
  func.func @_net_z_kernel(%arg0: i32, %arg1: memref<128x8xf32, #tpu.memory_space<vmem>>, %arg2: memref<8x256xf32, #tpu.memory_space<vmem>>, %arg3: memref<1x256xf32, #tpu.memory_space<vmem>>, %arg4: memref<256x256xbf16, #tpu.memory_space<vmem>>, %arg5: memref<1x256xf32, #tpu.memory_space<vmem>>, %arg6: memref<256x128xbf16, #tpu.memory_space<vmem>>, %arg7: memref<1x128xf32, #tpu.memory_space<vmem>>, %arg8: memref<128x128xbf16, #tpu.memory_space<vmem>>) attributes {dimension_semantics = [#tpu.dimension_semantics<parallel>], iteration_bounds = array<i64: 2>, scalar_prefetch = 0 : i64, scratch_operands = 0 : i64, tpu.core_type = #tpu.core_type<tc>, window_params = [{transform_indices = @transform_0, window_bounds = array<i64: 128, 8>}, {pipeline_mode = #tpu.pipeline_mode<synchronous>, transform_indices = @transform_1, window_bounds = array<i64: 8, 256>}, {pipeline_mode = #tpu.pipeline_mode<synchronous>, transform_indices = @transform_2, window_bounds = array<i64: 1, 256>}, {pipeline_mode = #tpu.pipeline_mode<synchronous>, transform_indices = @transform_3, window_bounds = array<i64: 256, 256>}, {pipeline_mode = #tpu.pipeline_mode<synchronous>, transform_indices = @transform_4, window_bounds = array<i64: 1, 256>}, {pipeline_mode = #tpu.pipeline_mode<synchronous>, transform_indices = @transform_5, window_bounds = array<i64: 256, 128>}, {pipeline_mode = #tpu.pipeline_mode<synchronous>, transform_indices = @transform_6, window_bounds = array<i64: 1, 128>}, {transform_indices = @transform_7, window_bounds = array<i64: 128, 128>}]} {
    %c0 = arith.constant 0 : index
    %c0_0 = arith.constant 0 : index
    %0 = vector.load %arg1[%c0, %c0_0] : memref<128x8xf32, #tpu.memory_space<vmem>>, vector<128x8xf32>
    %c0_1 = arith.constant 0 : index
    %c0_2 = arith.constant 0 : index
    %1 = vector.load %arg2[%c0_1, %c0_2] : memref<8x256xf32, #tpu.memory_space<vmem>>, vector<8x256xf32>
    %cst = arith.constant dense<0.000000e+00> : vector<128x256xf32>
    %2 = tpu.matmul %0, %1, %cst {dimension_numbers = #tpu.dot_dimension_numbers<[1], [0], [0], [1], [0, 0, 1, 1], [], []>} : vector<128x8xf32>, vector<8x256xf32>, vector<128x256xf32> -> vector<128x256xf32>
    %c0_3 = arith.constant 0 : index
    %c0_4 = arith.constant 0 : index
    %3 = vector.load %arg3[%c0_3, %c0_4] : memref<1x256xf32, #tpu.memory_space<vmem>>, vector<1x256xf32>
    %4 = vector.broadcast %3 : vector<1x256xf32> to vector<128x256xf32>
    %5 = arith.addf %2, %4 : vector<128x256xf32>
    %cst_5 = arith.constant 0.000000e+00 : f32
    %6 = vector.broadcast %cst_5 : f32 to vector<128x256xf32>
    %7 = arith.maximumf %5, %6 : vector<128x256xf32>
    %8 = arith.truncf %7 : vector<128x256xf32> to vector<128x256xbf16>
    %c0_6 = arith.constant 0 : index
    %c0_7 = arith.constant 0 : index
    %9 = vector.load %arg4[%c0_6, %c0_7] : memref<256x256xbf16, #tpu.memory_space<vmem>>, vector<256x256xbf16>
    %cst_8 = arith.constant dense<0.000000e+00> : vector<128x256xf32>
    %10 = tpu.matmul %8, %9, %cst_8 {dimension_numbers = #tpu.dot_dimension_numbers<[1], [0], [0], [1], [0, 0, 1, 1], [], []>} : vector<128x256xbf16>, vector<256x256xbf16>, vector<128x256xf32> -> vector<128x256xf32>
    %c0_9 = arith.constant 0 : index
    %c0_10 = arith.constant 0 : index
    %11 = vector.load %arg5[%c0_9, %c0_10] : memref<1x256xf32, #tpu.memory_space<vmem>>, vector<1x256xf32>
    %12 = vector.broadcast %11 : vector<1x256xf32> to vector<128x256xf32>
    %13 = arith.addf %10, %12 : vector<128x256xf32>
    %cst_11 = arith.constant 0.000000e+00 : f32
    %14 = vector.broadcast %cst_11 : f32 to vector<128x256xf32>
    %15 = arith.maximumf %13, %14 : vector<128x256xf32>
    %16 = arith.truncf %15 : vector<128x256xf32> to vector<128x256xbf16>
    %c0_12 = arith.constant 0 : index
    %c0_13 = arith.constant 0 : index
    %17 = vector.load %arg6[%c0_12, %c0_13] : memref<256x128xbf16, #tpu.memory_space<vmem>>, vector<256x128xbf16>
    %cst_14 = arith.constant dense<0.000000e+00> : vector<128x128xf32>
    %18 = tpu.matmul %16, %17, %cst_14 {dimension_numbers = #tpu.dot_dimension_numbers<[1], [0], [0], [1], [0, 0, 1, 1], [], []>} : vector<128x256xbf16>, vector<256x128xbf16>, vector<128x128xf32> -> vector<128x128xf32>
    %c0_15 = arith.constant 0 : index
    %c0_16 = arith.constant 0 : index
    %19 = vector.load %arg7[%c0_15, %c0_16] : memref<1x128xf32, #tpu.memory_space<vmem>>, vector<1x128xf32>
    %20 = vector.broadcast %19 : vector<1x128xf32> to vector<128x128xf32>
    %21 = arith.addf %18, %20 : vector<128x128xf32>
    %22 = arith.truncf %21 : vector<128x128xf32> to vector<128x128xbf16>
    %c0_17 = arith.constant 0 : index
    %c0_18 = arith.constant 0 : index
    %23 = vector.load %arg8[%c0_17, %c0_18] : memref<128x128xbf16, #tpu.memory_space<vmem>>, vector<128x128xbf16>
    tpu.vector_store %arg8[%c0_17, %c0_18], %22 {strides = array<i32>} : memref<128x128xbf16, #tpu.memory_space<vmem>>, vector<128x128xbf16>,
    return
  }
  func.func @transform_0(%arg0: i32) -> (i32, i32) {
    %c0_i32 = arith.constant 0 : i32
    %c0_i32_0 = arith.constant 0 : i32
    return %arg0, %c0_i32 : i32, i32
  }
  func.func @transform_1(%arg0: i32) -> (i32, i32) {
    %c0_i32 = arith.constant 0 : i32
    %c0_i32_0 = arith.constant 0 : i32
    %c0_i32_1 = arith.constant 0 : i32
    return %c0_i32, %c0_i32_0 : i32, i32
  }
  func.func @transform_2(%arg0: i32) -> (i32, i32) {
    %c0_i32 = arith.constant 0 : i32
    %c0_i32_0 = arith.constant 0 : i32
    %c0_i32_1 = arith.constant 0 : i32
    return %c0_i32, %c0_i32_0 : i32, i32
  }
  func.func @transform_3(%arg0: i32) -> (i32, i32) {
    %c0_i32 = arith.constant 0 : i32
    %c0_i32_0 = arith.constant 0 : i32
    %c0_i32_1 = arith.constant 0 : i32
    return %c0_i32, %c0_i32_0 : i32, i32
  }
  func.func @transform_4(%arg0: i32) -> (i32, i32) {
    %c0_i32 = arith.constant 0 : i32
    %c0_i32_0 = arith.constant 0 : i32
    %c0_i32_1 = arith.constant 0 : i32
    return %c0_i32, %c0_i32_0 : i32, i32
  }
  func.func @transform_5(%arg0: i32) -> (i32, i32) {
    %c0_i32 = arith.constant 0 : i32
    %c0_i32_0 = arith.constant 0 : i32
    %c0_i32_1 = arith.constant 0 : i32
    return %c0_i32, %c0_i32_0 : i32, i32
  }
  func.func @transform_6(%arg0: i32) -> (i32, i32) {
    %c0_i32 = arith.constant 0 : i32
    %c0_i32_0 = arith.constant 0 : i32
    %c0_i32_1 = arith.constant 0 : i32
    return %c0_i32, %c0_i32_0 : i32, i32
  }
  func.func @transform_7(%arg0: i32) -> (i32, i32) {
    %c0_i32 = arith.constant 0 : i32
    %c0_i32_0 = arith.constant 0 : i32
    return %arg0, %c0_i32 : i32, i32
  }
}

</mosaic_0001>

<llo_original>
// kernel: tpu_custom_call.1
$region0: #{tpu_custom_call.1}
  #allocation0 [shape = 'u32[]', space=smem, size = 0x4, offset = 0x4, fixed_abs, tag = 'smem constant byte address 0x4 - core index']
  #allocation1 [shape = 'u32[144,128]{1,0:T(1,128)}', space=vmem, size = 0x12000, scoped, tag = 'internal scratch']
  %s0 = inlined_call_operand.vmem [shape: f32[256,8], index: 0, kind: input, shape index: {}]
  %s1 = inlined_call_operand.vmem [shape: f32[8,256], index: 1, kind: input, shape index: {}]
  %s2 = inlined_call_operand.vmem [shape: f32[1,256], index: 2, kind: input, shape index: {}]
  %s3 = inlined_call_operand.vmem [shape: bf16[256,256], index: 3, kind: input, shape index: {}]
  %s4 = inlined_call_operand.vmem [shape: f32[1,256], index: 4, kind: input, shape index: {}]
  %s5 = inlined_call_operand.hbm [shape: bf16[256,128], index: 5, kind: input, shape index: {}]
  %s6 = inlined_call_operand.vmem [shape: f32[1,128], index: 6, kind: input, shape index: {}]
  %s7 = inlined_call_operand.hbm [shape: bf16[256,128], index: 7, kind: output, shape index: {}]
  %s8 = sld [smem:[#allocation0]]
  $region65: #{tpu_custom_call.1} parent=0
    _
  %s10 = ssub.s32 1, %s8
  %s11 = scalar_select 0, %s10, %s8
  $region1: #{tpu_custom_call.1} parent=0
    #allocation2 [shape = 'u8[65536]{0}', space=vmem, size = 0x10000, scoped, tag = 'input window, operand 5, single buffered']
    #allocation3 [shape = 's32[2]{0}', space=sflag, size = 0x8, scoped, tag = 'scoped memory for tpu_custom_call.1']
    #allocation4 [shape = 's32[2]{0}', space=sflag, size = 0x8, scoped, tag = 'scoped memory for tpu_custom_call.1']
    #allocation5 [shape = 'u8[65536]{0}', space=vmem, size = 0x10000, scoped, tag = 'output window, operand 0']
    %12 = vsyncpa [#allocation3], 0
    %13 = vsyncpa [#allocation4], 0
    %s14 = scalar_lea.sflag [#allocation4], 1
    %15 = vsyncpa %s14, 0
    loop: start=0, step=1, limit=4
    $region2: #{tpu_custom_call.1} parent=1 // loop_pre_header
      _
    $region3: #{tpu_custom_call.1} parent=1 // loop_header
      %s17 = sphi 0, %s21
      %p18 = scmp.ge.s32.totalorder %s17, 4
      %s27 = sphi 0, %s29
      %s30 = sphi 0, %s27
      %s31 = sphi 0, %s30
      %s47 = sphi 0, %s31
      %s51 = sphi 0, %s51
      %s53 = sphi 0, %s51
      %s54 = sphi 0, %s53
      %s68 = sphi 0, %s54
      %s72 = sphi 0, %s72
      %s74 = sphi 0, %s72
      %s75 = sphi 0, %s74
      %s89 = sphi 0, %s75
      %s93 = sphi 0, %s93
      %s95 = sphi 0, %s93
      %s96 = sphi 0, %s95
      %s110 = sphi 0, %s96
      %s114 = sphi 0, %s114
      %s116 = sphi 0, %s114
      %s117 = sphi 0, %s116
      %s131 = sphi 0, %s117
      %s135 = sphi 0, %s135
      %s137 = sphi 0, %s135
      %s138 = sphi 0, %s137
      %s152 = sphi 0, %s138
      %s156 = sphi 0, %s156
      %s158 = sphi 0, %s156
      %s159 = sphi 0, %s158
      %s173 = sphi 0, %s159
      %s179 = sphi 0, %s181
      %s182 = sphi 0, %s179
      %s183 = sphi 0, %s182
      %s199 = sphi 0, %s183
    $region4: #{tpu_custom_call.1} parent=1 // loop_header_branch
      %20 = sbr.rel (%p18) target = $region8
    $region5: #{tpu_custom_call.1} parent=1 // loop_body
      %s22 = ssub.s32 %s17, 1
      %s23 = ssub.s32 %s17, 2
      %s24 = sadd.s32 %s17, 1
      %s25 = ssub.s32 %s17, %s24
      %p26 = scmp.eq.s32.totalorder %s25, 0
      %s28 = sadd.s32 %s27, 1
      %s29 = scalar_select %p26, %s27, %s28
      %p32 = pneg %p26
      %p33 = scmp.eq.s32.totalorder %s17, 1
      %p34 = por %p32, %p33
      %p35 = scmp.ne.s32.totalorder %s27, %s30
      %p36 = scmp.eq.s32.totalorder %s17, 0
      %p37 = por %p35, %p36
      %p38 = scmp.ne.s32.totalorder %s27, %s30
      %p39 = scmp.eq.s32.totalorder %s22, 1
      %p40 = por %p38, %p39
      %p41 = scmp.ne.s32.totalorder %s30, %s31
      %p42 = scmp.eq.s32.totalorder %s22, 0
      %p43 = por %p41, %p42
      %p44 = scmp.ne.s32.totalorder %s30, %s31
      %p45 = scmp.eq.s32.totalorder %s23, 1
      %p46 = por %p44, %p45
      %p48 = scmp.ne.s32.totalorder %s31, %s47
      %p49 = scmp.eq.s32.totalorder %s23, 0
      %p50 = por %p48, %p49
      %s52 = sadd.s32 %s51, 1
      %p55 = scmp.eq.s32.totalorder %s17, 1
      %p56 = scmp.ne.s32.totalorder %s51, %s53
      %p57 = scmp.eq.s32.totalorder %s17, 0
      %p58 = por %p56, %p57
      %p59 = scmp.ne.s32.totalorder %s51, %s53
      %p60 = scmp.eq.s32.totalorder %s22, 1
      %p61 = por %p59, %p60
      %p62 = scmp.ne.s32.totalorder %s53, %s54
      %p63 = scmp.eq.s32.totalorder %s22, 0
      %p64 = por %p62, %p63
      %p65 = scmp.ne.s32.totalorder %s53, %s54
      %p66 = scmp.eq.s32.totalorder %s23, 1
      %p67 = por %p65, %p66
      %p69 = scmp.ne.s32.totalorder %s54, %s68
      %p70 = scmp.eq.s32.totalorder %s23, 0
      %p71 = por %p69, %p70
      %s73 = sadd.s32 %s72, 1
      %p76 = scmp.eq.s32.totalorder %s17, 1
      %p77 = scmp.ne.s32.totalorder %s72, %s74
      %p78 = scmp.eq.s32.totalorder %s17, 0
      %p79 = por %p77, %p78
      %p80 = scmp.ne.s32.totalorder %s72, %s74
      %p81 = scmp.eq.s32.totalorder %s22, 1
      %p82 = por %p80, %p81
      %p83 = scmp.ne.s32.totalorder %s74, %s75
      %p84 = scmp.eq.s32.totalorder %s22, 0
      %p85 = por %p83, %p84
      %p86 = scmp.ne.s32.totalorder %s74, %s75
      %p87 = scmp.eq.s32.totalorder %s23, 1
      %p88 = por %p86, %p87
      %p90 = scmp.ne.s32.totalorder %s75, %s89
      %p91 = scmp.eq.s32.totalorder %s23, 0
      %p92 = por %p90, %p91
      %s94 = sadd.s32 %s93, 1
      %p97 = scmp.eq.s32.totalorder %s17, 1
      %p98 = scmp.ne.s32.totalorder %s93, %s95
      %p99 = scmp.eq.s32.totalorder %s17, 0
      %p100 = por %p98, %p99
      %p101 = scmp.ne.s32.totalorder %s93, %s95
      %p102 = scmp.eq.s32.totalorder %s22, 1
      %p103 = por %p101, %p102
      %p104 = scmp.ne.s32.totalorder %s95, %s96
      %p105 = scmp.eq.s32.totalorder %s22, 0
      %p106 = por %p104, %p105
      %p107 = scmp.ne.s32.totalorder %s95, %s96
      %p108 = scmp.eq.s32.totalorder %s23, 1
      %p109 = por %p107, %p108
      %p111 = scmp.ne.s32.totalorder %s96, %s110
      %p112 = scmp.eq.s32.totalorder %s23, 0
      %p113 = por %p111, %p112
      %s115 = sadd.s32 %s114, 1
      %p118 = scmp.eq.s32.totalorder %s17, 1
      %p119 = scmp.ne.s32.totalorder %s114, %s116
      %p120 = scmp.eq.s32.totalorder %s17, 0
      %p121 = por %p119, %p120
      %p122 = scmp.ne.s32.totalorder %s114, %s116
      %p123 = scmp.eq.s32.totalorder %s22, 1
      %p124 = por %p122, %p123
      %p125 = scmp.ne.s32.totalorder %s116, %s117
      %p126 = scmp.eq.s32.totalorder %s22, 0
      %p127 = por %p125, %p126
      %p128 = scmp.ne.s32.totalorder %s116, %s117
      %p129 = scmp.eq.s32.totalorder %s23, 1
      %p130 = por %p128, %p129
      %p132 = scmp.ne.s32.totalorder %s117, %s131
      %p133 = scmp.eq.s32.totalorder %s23, 0
      %p134 = por %p132, %p133
      %s136 = sadd.s32 %s135, 1
      %p139 = scmp.eq.s32.totalorder %s17, 1
      %p140 = scmp.ne.s32.totalorder %s135, %s137
      %p141 = scmp.eq.s32.totalorder %s17, 0
      %p142 = por %p140, %p141
      %p143 = scmp.ne.s32.totalorder %s135, %s137
      %p144 = scmp.eq.s32.totalorder %s22, 1
      %p145 = por %p143, %p144
      %p146 = scmp.ne.s32.totalorder %s137, %s138
      %p147 = scmp.eq.s32.totalorder %s22, 0
      %p148 = por %p146, %p147
      %p149 = scmp.ne.s32.totalorder %s137, %s138
      %p150 = scmp.eq.s32.totalorder %s23, 1
      %p151 = por %p149, %p150
      %p153 = scmp.ne.s32.totalorder %s138, %s152
      %p154 = scmp.eq.s32.totalorder %s23, 0
      %p155 = por %p153, %p154
      %s157 = sadd.s32 %s156, 1
      %p160 = scmp.eq.s32.totalorder %s17, 1
      %p161 = scmp.ne.s32.totalorder %s156, %s158
      %p162 = scmp.eq.s32.totalorder %s17, 0
      %p163 = por %p161, %p162
      %p164 = scmp.ne.s32.totalorder %s156, %s158
      %p165 = scmp.eq.s32.totalorder %s22, 1
      %p166 = por %p164, %p165
      %p167 = scmp.ne.s32.totalorder %s158, %s159
      %p168 = scmp.eq.s32.totalorder %s22, 0
      %p169 = por %p167, %p168
      %p170 = scmp.ne.s32.totalorder %s158, %s159
      %p171 = scmp.eq.s32.totalorder %s23, 1
      %p172 = por %p170, %p171
      %p174 = scmp.ne.s32.totalorder %s159, %s173
      %p175 = scmp.eq.s32.totalorder %s23, 0
      %p176 = por %p174, %p175
      %s177 = ssub.s32 %s17, %s24
      %p178 = scmp.eq.s32.totalorder %s177, 0
      %s180 = sadd.s32 %s179, 1
      %s181 = scalar_select %p178, %s179, %s180
      %p184 = pneg %p178
      %p185 = scmp.eq.s32.totalorder %s17, 1
      %p186 = por %p184, %p185
      %p187 = scmp.ne.s32.totalorder %s179, %s182
      %p188 = scmp.eq.s32.totalorder %s17, 0
      %p189 = por %p187, %p188
      %p190 = scmp.ne.s32.totalorder %s179, %s182
      %p191 = scmp.eq.s32.totalorder %s22, 1
      %p192 = por %p190, %p191
      %p193 = scmp.ne.s32.totalorder %s182, %s183
      %p194 = scmp.eq.s32.totalorder %s22, 0
      %p195 = por %p193, %p194
      %p196 = scmp.ne.s32.totalorder %s182, %s183
      %p197 = scmp.eq.s32.totalorder %s23, 1
      %p198 = por %p196, %p197
      %p200 = scmp.ne.s32.totalorder %s183, %s199
      %p201 = scmp.eq.s32.totalorder %s23, 0
      %p202 = por %p200, %p201
      %p203 = scmp.le.s32.totalorder 1, %s17
      %p204 = scmp.lt.s32.totalorder %s17, 3
      %p205 = pnand %p203, %p204
      %p206 = pneg %p205
      // Predicated region
      $region9: #{tpu_custom_call.1} parent=5 // pred_check
        _
      $region10: #{tpu_custom_call.1} parent=5 // pred_check_branch
        %208 = sbr.rel (%p205) target = $region12
      $region11: #{tpu_custom_call.1} parent=5 // pred_region
        %s209 = ssub.s32 %s17, 1
        // Predicated region
        $region13: #{tpu_custom_call.1} parent=11 // pred_check
          %p210 = pneg %p64
        $region14: #{tpu_custom_call.1} parent=11 // pred_check_branch
          %212 = sbr.rel (%p210) target = $region16
        $region15: #{tpu_custom_call.1} parent=11 // pred_region
          _
        $region16: #{tpu_custom_call.1} parent=11 // pred_fallthru
          _
        // Predicated region
        $region17: #{tpu_custom_call.1} parent=11 // pred_check
          %p213 = pneg %p85
        $region18: #{tpu_custom_call.1} parent=11 // pred_check_branch
          %215 = sbr.rel (%p213) target = $region20
        $region19: #{tpu_custom_call.1} parent=11 // pred_region
          _
        $region20: #{tpu_custom_call.1} parent=11 // pred_fallthru
          _
        // Predicated region
        $region21: #{tpu_custom_call.1} parent=11 // pred_check
          %p216 = pneg %p106
        $region22: #{tpu_custom_call.1} parent=11 // pred_check_branch
          %218 = sbr.rel (%p216) target = $region24
        $region23: #{tpu_custom_call.1} parent=11 // pred_region
          _
        $region24: #{tpu_custom_call.1} parent=11 // pred_fallthru
          _
        // Predicated region
        $region25: #{tpu_custom_call.1} parent=11 // pred_check
          %p219 = pneg %p127
        $region26: #{tpu_custom_call.1} parent=11 // pred_check_branch
          %221 = sbr.rel (%p219) target = $region28
        $region27: #{tpu_custom_call.1} parent=11 // pred_region
          _
        $region28: #{tpu_custom_call.1} parent=11 // pred_fallthru
          _
        // Predicated region
        $region29: #{tpu_custom_call.1} parent=11 // pred_check
          %p222 = pneg %p148
        $region30: #{tpu_custom_call.1} parent=11 // pred_check_branch
          %224 = sbr.rel (%p222) target = $region32
        $region31: #{tpu_custom_call.1} parent=11 // pred_region
          %s226 = ssub.s32 2048, 2048
          %227 = vsyncadd [#allocation3], %s226
          %s228 = sshll.u32 [#allocation2], 4
          %s229 = int_to_ptr.vmem [resolvable:$true] %s228
          %234 = dma.hbm_to_vmem [thread:$0]  %s5, 2048, %s229, [#allocation3], 64, 64, 4
        $region32: #{tpu_custom_call.1} parent=11 // pred_fallthru
          _
        // Predicated region
        $region33: #{tpu_custom_call.1} parent=11 // pred_check
          %p235 = pneg %p169
        $region34: #{tpu_custom_call.1} parent=11 // pred_check_branch
          %237 = sbr.rel (%p235) target = $region36
        $region35: #{tpu_custom_call.1} parent=11 // pred_region
          _
        $region36: #{tpu_custom_call.1} parent=11 // pred_fallthru
          _
      $region12: #{tpu_custom_call.1} parent=5 // pred_fallthru
        _
      %p238 = scmp.lt.s32.totalorder %s17, 2
      // Predicated region
      $region37: #{tpu_custom_call.1} parent=5 // pred_check
        %p239 = pneg %p238
      $region38: #{tpu_custom_call.1} parent=5 // pred_check_branch
        %241 = sbr.rel (%p239) target = $region40
      $region39: #{tpu_custom_call.1} parent=5 // pred_region
        // Predicated region
        $region41: #{tpu_custom_call.1} parent=39 // pred_check
          %p242 = pneg %p37
        $region42: #{tpu_custom_call.1} parent=39 // pred_check_branch
          %244 = sbr.rel (%p242) target = $region44
        $region43: #{tpu_custom_call.1} parent=39 // pred_region
          %s245 = smul.u32 16, %s17
          %p246 = scmp.lt.s32.totalorder %s245, 31
          %s247 = scalar_select %p246, %s245, 31
          %s248 = smul.addr %s247, 8
          %s249 = scalar_lea.vmem %s0, %s248
          %s250 = smul.u32 16, %s17
        $region44: #{tpu_custom_call.1} parent=39 // pred_fallthru
          _
      $region40: #{tpu_custom_call.1} parent=5 // pred_fallthru
        _
      %p251 = scmp.le.s32.totalorder 1, %s17
      %p252 = scmp.lt.s32.totalorder %s17, 3
      %p253 = pnand %p251, %p252
      %p254 = pneg %p253
      // Predicated region
      $region45: #{tpu_custom_call.1} parent=5 // pred_check
        _
      $region46: #{tpu_custom_call.1} parent=5 // pred_check_branch
        %256 = sbr.rel (%p253) target = $region48
      $region47: #{tpu_custom_call.1} parent=5 // pred_region
        %s257 = ssub.s32 %s17, 1
        // Predicated region
        $region49: #{tpu_custom_call.1} parent=47 // pred_check
          %p258 = pneg %p148
        $region50: #{tpu_custom_call.1} parent=47 // pred_check_branch
          %260 = sbr.rel (%p258) target = $region52
        $region51: #{tpu_custom_call.1} parent=47 // pred_region
          %261 = dma.done [#allocation3], 2048
        $region52: #{tpu_custom_call.1} parent=47 // pred_fallthru
          _
        %s262 = smul.u32 16, %s22
        %p263 = scmp.lt.s32.totalorder %s262, 31
        %s264 = scalar_select %p263, %s262, 31
        %s265 = smul.addr %s264, 8
        %s266 = scalar_lea.vmem %s0, %s265
        %p267 = pneg %p43
        %p268 = pneg %p40
        %p269 = pneg %p64
        %p270 = pneg %p61
        %p271 = pneg %p85
        %p272 = pneg %p82
        %p273 = pneg %p106
        %p274 = pneg %p103
        %p275 = pneg %p127
        %p276 = pneg %p124
        %p277 = pneg %p148
        %p278 = pneg %p145
        %p279 = pneg %p169
        %p280 = pneg %p166
        %p281 = pneg %p195
        %p282 = pneg %p192
        %s283 = sand.u32 %s182, 1
        %s284 = scalar_lea.sflag [#allocation4], %s283
        %s285 = sand.u32 %s182, 1
        %s286 = smul.addr %s285, 64
        %s287 = scalar_lea.vmem [#allocation5], %s286
        %s288 = smul.u32 16, %s22
        %p289 = scmp.lt.s32.totalorder %s288, 31
        %s290 = scalar_select %p289, %s288, 31
        %s291 = smul.addr %s290, 8
        %s292 = scalar_lea.vmem %s0, %s291
        %s293 = smul.u32 16, %s22
        %s294 = smul.u32 16, %s22
        %v296 = vld [vmem:[%s292] sm:$0xff]
        %v297 = vld [vmem:[%s292 + $0x8] sm:$0xff]
        %v298 = vld [vmem:[%s292 + $0x10] sm:$0xff]
        %v299 = vld [vmem:[%s292 + $0x18] sm:$0xff]
        %v300 = vld [vmem:[%s292 + $0x20] sm:$0xff]
        %v301 = vld [vmem:[%s292 + $0x28] sm:$0xff]
        %v302 = vld [vmem:[%s292 + $0x30] sm:$0xff]
        %v303 = vld [vmem:[%s292 + $0x38] sm:$0xff]
        %v304 = vld [vmem:[%s292 + $0x40] sm:$0xff]
        %v305 = vld [vmem:[%s292 + $0x48] sm:$0xff]
        %v306 = vld [vmem:[%s292 + $0x50] sm:$0xff]
        %v307 = vld [vmem:[%s292 + $0x58] sm:$0xff]
        %v308 = vld [vmem:[%s292 + $0x60] sm:$0xff]
        %v309 = vld [vmem:[%s292 + $0x68] sm:$0xff]
        %v310 = vld [vmem:[%s292 + $0x70] sm:$0xff]
        %v311 = vld [vmem:[%s292 + $0x78] sm:$0xff]
        %v312 = vld [vmem:[%s1] sm:$0xff]
        %v313 = vld [vmem:[%s1 + $0x8] sm:$0xff]
        %v314 = vld [vmem:[%s2] sm:$0x3]
        %v316 = vlaneseq
        %v317 = vshrl.u32 %v316, 7
        %v318 = vsub.s32 0, %v317
        %v319 = vrot.slane %v314, %v318
        %v320 = vlaneseq
        %v321 = vshrl.u32 %v320, 7
        %v322 = vsub.s32 1, %v321
        %v323 = vrot.slane %v314, %v322
        %vm326 = vcmask 64512
        %v328 = vsel %vm326, %v296, 0
        %v331 = vsel %vm326, %v297, 0
        %v334 = vsel %vm326, %v298, 0
        %v337 = vsel %vm326, %v299, 0
        %v340 = vsel %vm326, %v300, 0
        %v343 = vsel %vm326, %v301, 0
        %v346 = vsel %vm326, %v302, 0
        %v349 = vsel %vm326, %v303, 0
        %v352 = vsel %vm326, %v304, 0
        %v355 = vsel %vm326, %v305, 0
        %v358 = vsel %vm326, %v306, 0
        %v361 = vsel %vm326, %v307, 0
        %v364 = vsel %vm326, %v308, 0
        %v367 = vsel %vm326, %v309, 0
        %v370 = vsel %vm326, %v310, 0
        %v373 = vsel %vm326, %v311, 0
        %375 = vmatprep.subr.mxu0 %v313
        %376 = vmatpush1.msra.mxu0 %v312
        %377 = vmatprep.subr.mxu0 0.0
        %378 = vmatpush1.msra.mxu0 0.0
        %379 = vmatprep.subr.mxu0 0.0
        %380 = vmatpush1.msra.mxu0 0.0
        %381 = vmatprep.subr.mxu0 0.0
        %382 = vmatpush1.msra.mxu0 0.0
        %383 = vmatprep.subr.mxu0 0.0
        %384 = vmatpush1.msra.mxu0 0.0
        %385 = vmatprep.subr.mxu0 0.0
        %386 = vmatpush1.msra.mxu0 0.0
        %387 = vmatprep.subr.mxu0 0.0
        %388 = vmatpush1.msra.mxu0 0.0
        %389 = vmatprep.subr.mxu0 0.0
        %390 = vmatpush1.msra.mxu0 0.0
        %391 = vmatprep.subr.mxu0 0.0
        %392 = vmatpush1.msra.mxu0 0.0
        %393 = vmatprep.subr.mxu0 0.0
        %394 = vmatpush1.msra.mxu0 0.0
        %395 = vmatprep.subr.mxu0 0.0
        %396 = vmatpush1.msra.mxu0 0.0
        %397 = vmatprep.subr.mxu0 0.0
        %398 = vmatpush1.msra.mxu0 0.0
        %399 = vmatprep.subr.mxu0 0.0
        %400 = vmatpush1.msra.mxu0 0.0
        %401 = vmatprep.subr.mxu0 0.0
        %402 = vmatpush1.msra.mxu0 0.0
        %403 = vmatprep.subr.mxu0 0.0
        %404 = vmatpush1.msra.mxu0 0.0
        %405 = vmatprep.subr.mxu0 0.0
        %406 = vmatpush1.msra.mxu0 0.0
        %407 = vmatprep.subr.mxu0 0.0
        %408 = vmatpush1.msra.mxu0 0.0
        %409 = vmatprep.subr.mxu0 0.0
        %410 = vmatpush1.msra.mxu0 0.0
        %411 = vmatprep.subr.mxu0 0.0
        %412 = vmatpush1.msra.mxu0 0.0
        %413 = vmatprep.subr.mxu0 0.0
        %414 = vmatpush1.msra.mxu0 0.0
        %415 = vmatprep.subr.mxu0 0.0
        %416 = vmatpush1.msra.mxu0 0.0
        %417 = vmatprep.subr.mxu0 0.0
        %418 = vmatpush1.msra.mxu0 0.0
        %419 = vmatprep.subr.mxu0 0.0
        %420 = vmatpush1.msra.mxu0 0.0
        %421 = vmatprep.subr.mxu0 0.0
        %422 = vmatpush1.msra.mxu0 0.0
        %423 = vmatprep.subr.mxu0 0.0
        %424 = vmatpush1.msra.mxu0 0.0
        %425 = vmatprep.subr.mxu0 0.0
        %426 = vmatpush1.msra.mxu0 0.0
        %427 = vmatprep.subr.mxu0 0.0
        %428 = vmatpush1.msra.mxu0 0.0
        %429 = vmatprep.subr.mxu0 0.0
        %430 = vmatpush1.msra.mxu0 0.0
        %431 = vmatprep.subr.mxu0 0.0
        %432 = vmatpush1.msra.mxu0 0.0
        %433 = vmatprep.subr.mxu0 0.0
        %434 = vmatpush1.msra.mxu0 0.0
        %435 = vmatprep.subr.mxu0 0.0
        %436 = vmatpush1.msra.mxu0 0.0
        %437 = vmatprep.subr.mxu0 0.0
        %438 = vmatpush1.msra.mxu0 0.0
        %439 = vmatprep.mubr.f32.mxu0 0.0
        %440 = vmatmul.mubr.f32.gmra.mrb[0].mxu0 %v328
        %v441 = vpop.f32.mrb[0].mxu0
        %v442 = vadd.f32 %v319, %v441
        %v443 = vpop.f32.mrb[0].mxu0
        %v444 = vadd.f32 %v323, %v443
        %445 = vmatprep.mubr.f32.mxu0 0.0
        %446 = vmatmul.mubr.f32.gmra.mrb[0].mxu0 %v331
        %v447 = vpop.f32.mrb[0].mxu0
        %v448 = vadd.f32 %v319, %v447
        %v449 = vpop.f32.mrb[0].mxu0
        %v450 = vadd.f32 %v323, %v449
        %451 = vmatprep.mubr.f32.mxu0 0.0
        %452 = vmatmul.mubr.f32.gmra.mrb[0].mxu0 %v334
        %v453 = vpop.f32.mrb[0].mxu0
        %v454 = vadd.f32 %v319, %v453
        %v455 = vpop.f32.mrb[0].mxu0
        %v456 = vadd.f32 %v323, %v455
        %457 = vmatprep.mubr.f32.mxu0 0.0
        %458 = vmatmul.mubr.f32.gmra.mrb[0].mxu0 %v337
        %v459 = vpop.f32.mrb[0].mxu0
        %v460 = vadd.f32 %v319, %v459
        %v461 = vpop.f32.mrb[0].mxu0
        %v462 = vadd.f32 %v323, %v461
        %463 = vmatprep.mubr.f32.mxu0 0.0
        %464 = vmatmul.mubr.f32.gmra.mrb[0].mxu0 %v340
        %v465 = vpop.f32.mrb[0].mxu0
        %v466 = vadd.f32 %v319, %v465
        %v467 = vpop.f32.mrb[0].mxu0
        %v468 = vadd.f32 %v323, %v467
        %469 = vmatprep.mubr.f32.mxu0 0.0
        %470 = vmatmul.mubr.f32.gmra.mrb[0].mxu0 %v343
        %v471 = vpop.f32.mrb[0].mxu0
        %v472 = vadd.f32 %v319, %v471
        %v473 = vpop.f32.mrb[0].mxu0
        %v474 = vadd.f32 %v323, %v473
        %475 = vmatprep.mubr.f32.mxu0 0.0
        %476 = vmatmul.mubr.f32.gmra.mrb[0].mxu0 %v346
        %v477 = vpop.f32.mrb[0].mxu0
        %v478 = vadd.f32 %v319, %v477
        %v479 = vpop.f32.mrb[0].mxu0
        %v480 = vadd.f32 %v323, %v479
        %481 = vmatprep.mubr.f32.mxu0 0.0
        %482 = vmatmul.mubr.f32.gmra.mrb[0].mxu0 %v349
        %v483 = vpop.f32.mrb[0].mxu0
        %v484 = vadd.f32 %v319, %v483
        %v485 = vpop.f32.mrb[0].mxu0
        %v486 = vadd.f32 %v323, %v485
        %487 = vmatprep.mubr.f32.mxu0 0.0
        %488 = vmatmul.mubr.f32.gmra.mrb[0].mxu0 %v352
        %v489 = vpop.f32.mrb[0].mxu0
        %v490 = vadd.f32 %v319, %v489
        %v491 = vpop.f32.mrb[0].mxu0
        %v492 = vadd.f32 %v323, %v491
        %493 = vmatprep.mubr.f32.mxu0 0.0
        %494 = vmatmul.mubr.f32.gmra.mrb[0].mxu0 %v355
        %v495 = vpop.f32.mrb[0].mxu0
        %v496 = vadd.f32 %v319, %v495
        %v497 = vpop.f32.mrb[0].mxu0
        %v498 = vadd.f32 %v323, %v497
        %499 = vmatprep.mubr.f32.mxu0 0.0
        %500 = vmatmul.mubr.f32.gmra.mrb[0].mxu0 %v358
        %v501 = vpop.f32.mrb[0].mxu0
        %v502 = vadd.f32 %v319, %v501
        %v503 = vpop.f32.mrb[0].mxu0
        %v504 = vadd.f32 %v323, %v503
        %505 = vmatprep.mubr.f32.mxu0 0.0
        %506 = vmatmul.mubr.f32.gmra.mrb[0].mxu0 %v361
        %v507 = vpop.f32.mrb[0].mxu0
        %v508 = vadd.f32 %v319, %v507
        %v509 = vpop.f32.mrb[0].mxu0
        %v510 = vadd.f32 %v323, %v509
        %511 = vmatprep.mubr.f32.mxu0 0.0
        %512 = vmatmul.mubr.f32.gmra.mrb[0].mxu0 %v364
        %v513 = vpop.f32.mrb[0].mxu0
        %v514 = vadd.f32 %v319, %v513
        %v515 = vpop.f32.mrb[0].mxu0
        %v516 = vadd.f32 %v323, %v515
        %517 = vmatprep.mubr.f32.mxu0 0.0
        %518 = vmatmul.mubr.f32.gmra.mrb[0].mxu0 %v367
        %v519 = vpop.f32.mrb[0].mxu0
        %v520 = vadd.f32 %v319, %v519
        %v521 = vpop.f32.mrb[0].mxu0
        %v522 = vadd.f32 %v323, %v521
        %523 = vmatprep.mubr.f32.mxu0 0.0
        %524 = vmatmul.mubr.f32.gmra.mrb[0].mxu0 %v370
        %v525 = vpop.f32.mrb[0].mxu0
        %v526 = vadd.f32 %v319, %v525
        %v527 = vpop.f32.mrb[0].mxu0
        %v528 = vadd.f32 %v323, %v527
        %529 = vmatprep.mubr.f32.mxu0 0.0
        %530 = vmatmul.mubr.f32.gmra.mrb[0].mxu0 %v373
        %v531 = vpop.f32.mrb[0].mxu0
        %v532 = vadd.f32 %v319, %v531
        %v533 = vpop.f32.mrb[0].mxu0
        %v534 = vadd.f32 %v323, %v533
        %535 = vdwg.mxu0
        %v536 = vmax.f32 %v442, 0.0
        %v537 = vmax.f32 %v444, 0.0
        %v538 = vmax.f32 %v448, 0.0
        %v539 = vmax.f32 %v450, 0.0
        %v540 = vmax.f32 %v454, 0.0
        %v541 = vmax.f32 %v456, 0.0
        %v542 = vmax.f32 %v460, 0.0
        %v543 = vmax.f32 %v462, 0.0
        %v544 = vmax.f32 %v466, 0.0
        %v545 = vmax.f32 %v468, 0.0
        %v546 = vmax.f32 %v472, 0.0
        %v547 = vmax.f32 %v474, 0.0
        %v548 = vmax.f32 %v478, 0.0
        %v549 = vmax.f32 %v480, 0.0
        %v550 = vmax.f32 %v484, 0.0
        %v551 = vmax.f32 %v486, 0.0
        %v552 = vmax.f32 %v490, 0.0
        %v553 = vmax.f32 %v492, 0.0
        %v554 = vmax.f32 %v496, 0.0
        %v555 = vmax.f32 %v498, 0.0
        %v556 = vmax.f32 %v502, 0.0
        %v557 = vmax.f32 %v504, 0.0
        %v558 = vmax.f32 %v508, 0.0
        %v559 = vmax.f32 %v510, 0.0
        %v560 = vmax.f32 %v514, 0.0
        %v561 = vmax.f32 %v516, 0.0
        %v562 = vmax.f32 %v520, 0.0
        %v563 = vmax.f32 %v522, 0.0
        %v564 = vmax.f32 %v526, 0.0
        %v565 = vmax.f32 %v528, 0.0
        %v566 = vmax.f32 %v532, 0.0
        %v567 = vmax.f32 %v534, 0.0
        %v568 = vpack.c.bf16 %v538, %v536
        %v569 = vpack.c.bf16 %v539, %v537
        %v570 = vpack.c.bf16 %v542, %v540
        %v571 = vpack.c.bf16 %v543, %v541
        %v572 = vpack.c.bf16 %v546, %v544
        %v573 = vpack.c.bf16 %v547, %v545
        %v574 = vpack.c.bf16 %v550, %v548
        %v575 = vpack.c.bf16 %v551, %v549
        %v576 = vpack.c.bf16 %v554, %v552
        %v577 = vpack.c.bf16 %v555, %v553
        %v578 = vpack.c.bf16 %v558, %v556
        %v579 = vpack.c.bf16 %v559, %v557
        %v580 = vpack.c.bf16 %v562, %v560
        %v581 = vpack.c.bf16 %v563, %v561
        %v582 = vpack.c.bf16 %v566, %v564
        %v583 = vpack.c.bf16 %v567, %v565
        %v584 = vld [vmem:[%s3] sm:$0xff]
        %v585 = vld [vmem:[%s3 + $0x8] sm:$0xff]
        %v586 = vld [vmem:[%s3 + $0x10] sm:$0xff]
        %v587 = vld [vmem:[%s3 + $0x18] sm:$0xff]
        %v588 = vld [vmem:[%s3 + $0x20] sm:$0xff]
        %v589 = vld [vmem:[%s3 + $0x28] sm:$0xff]
        %v590 = vld [vmem:[%s3 + $0x30] sm:$0xff]
        %v591 = vld [vmem:[%s3 + $0x38] sm:$0xff]
        %v592 = vld [vmem:[%s3 + $0x40] sm:$0xff]
        %v593 = vld [vmem:[%s3 + $0x48] sm:$0xff]
        %v594 = vld [vmem:[%s3 + $0x50] sm:$0xff]
        %v595 = vld [vmem:[%s3 + $0x58] sm:$0xff]
        %v596 = vld [vmem:[%s3 + $0x60] sm:$0xff]
        %v597 = vld [vmem:[%s3 + $0x68] sm:$0xff]
        %v598 = vld [vmem:[%s3 + $0x70] sm:$0xff]
        %v599 = vld [vmem:[%s3 + $0x78] sm:$0xff]
        %v600 = vld [vmem:[%s3 + $0x80] sm:$0xff]
        %v601 = vld [vmem:[%s3 + $0x88] sm:$0xff]
        %v602 = vld [vmem:[%s3 + $0x90] sm:$0xff]
        %v603 = vld [vmem:[%s3 + $0x98] sm:$0xff]
        %v604 = vld [vmem:[%s3 + $0xa0] sm:$0xff]
        %v605 = vld [vmem:[%s3 + $0xa8] sm:$0xff]
        %v606 = vld [vmem:[%s3 + $0xb0] sm:$0xff]
        %v607 = vld [vmem:[%s3 + $0xb8] sm:$0xff]
        %v608 = vld [vmem:[%s3 + $0xc0] sm:$0xff]
        %v609 = vld [vmem:[%s3 + $0xc8] sm:$0xff]
        %v610 = vld [vmem:[%s3 + $0xd0] sm:$0xff]
        %v611 = vld [vmem:[%s3 + $0xd8] sm:$0xff]
        %v612 = vld [vmem:[%s3 + $0xe0] sm:$0xff]
        %v613 = vld [vmem:[%s3 + $0xe8] sm:$0xff]
        %v614 = vld [vmem:[%s3 + $0xf0] sm:$0xff]
        %v615 = vld [vmem:[%s3 + $0xf8] sm:$0xff]
        %v616 = vld [vmem:[%s4] sm:$0x3]
        %v618 = vlaneseq
        %v619 = vshrl.u32 %v618, 7
        %v620 = vsub.s32 0, %v619
        %v621 = vrot.slane %v616, %v620
        %v622 = vlaneseq
        %v623 = vshrl.u32 %v622, 7
        %v624 = vsub.s32 1, %v623
        %v625 = vrot.slane %v616, %v624
        %v660 = vunpack.c.l.b16 %v584
        %v661 = vunpack.c.h.b16 %v584
        %v662 = vunpack.c.l.b16 %v585
        %v663 = vunpack.c.h.b16 %v585
        %v664 = vunpack.c.l.b16 %v586
        %v665 = vunpack.c.h.b16 %v586
        %v666 = vunpack.c.l.b16 %v587
        %v667 = vunpack.c.h.b16 %v587
        %v668 = vunpack.c.l.b16 %v588
        %v669 = vunpack.c.h.b16 %v588
        %v670 = vunpack.c.l.b16 %v589
        %v671 = vunpack.c.h.b16 %v589
        %v672 = vunpack.c.l.b16 %v590
        %v673 = vunpack.c.h.b16 %v590
        %v674 = vunpack.c.l.b16 %v591
        %v675 = vunpack.c.h.b16 %v591
        %v676 = vunpack.c.l.b16 %v592
        %v677 = vunpack.c.h.b16 %v592
        %v678 = vunpack.c.l.b16 %v593
        %v679 = vunpack.c.h.b16 %v593
        %v680 = vunpack.c.l.b16 %v594
        %v681 = vunpack.c.h.b16 %v594
        %v682 = vunpack.c.l.b16 %v595
        %v683 = vunpack.c.h.b16 %v595
        %v684 = vunpack.c.l.b16 %v596
        %v685 = vunpack.c.h.b16 %v596
        %v686 = vunpack.c.l.b16 %v597
        %v687 = vunpack.c.h.b16 %v597
        %v688 = vunpack.c.l.b16 %v598
        %v689 = vunpack.c.h.b16 %v598
        %v690 = vunpack.c.l.b16 %v599
        %v691 = vunpack.c.h.b16 %v599
        %v692 = vunpack.c.l.b16 %v600
        %v693 = vunpack.c.h.b16 %v600
        %v694 = vunpack.c.l.b16 %v601
        %v695 = vunpack.c.h.b16 %v601
        %v696 = vunpack.c.l.b16 %v602
        %v697 = vunpack.c.h.b16 %v602
        %v698 = vunpack.c.l.b16 %v603
        %v699 = vunpack.c.h.b16 %v603
        %v700 = vunpack.c.l.b16 %v604
        %v701 = vunpack.c.h.b16 %v604
        %v702 = vunpack.c.l.b16 %v605
        %v703 = vunpack.c.h.b16 %v605
        %v704 = vunpack.c.l.b16 %v606
        %v705 = vunpack.c.h.b16 %v606
        %v706 = vunpack.c.l.b16 %v607
        %v707 = vunpack.c.h.b16 %v607
        %v708 = vunpack.c.l.b16 %v608
        %v709 = vunpack.c.h.b16 %v608
        %v710 = vunpack.c.l.b16 %v609
        %v711 = vunpack.c.h.b16 %v609
        %v712 = vunpack.c.l.b16 %v610
        %v713 = vunpack.c.h.b16 %v610
        %v714 = vunpack.c.l.b16 %v611
        %v715 = vunpack.c.h.b16 %v611
        %v716 = vunpack.c.l.b16 %v612
        %v717 = vunpack.c.h.b16 %v612
        %v718 = vunpack.c.l.b16 %v613
        %v719 = vunpack.c.h.b16 %v613
        %v720 = vunpack.c.l.b16 %v614
        %v721 = vunpack.c.h.b16 %v614
        %v722 = vunpack.c.l.b16 %v615
        %v723 = vunpack.c.h.b16 %v615
        %v724 = vpack.c.b16 %v662, %v660
        %v725 = vpack.c.b16 %v663, %v661
        %v726 = vpack.c.b16 %v666, %v664
        %v727 = vpack.c.b16 %v667, %v665
        %v728 = vpack.c.b16 %v670, %v668
        %v729 = vpack.c.b16 %v671, %v669
        %v730 = vpack.c.b16 %v674, %v672
        %v731 = vpack.c.b16 %v675, %v673
        %v732 = vpack.c.b16 %v678, %v676
        %v733 = vpack.c.b16 %v679, %v677
        %v734 = vpack.c.b16 %v682, %v680
        %v735 = vpack.c.b16 %v683, %v681
        %v736 = vpack.c.b16 %v686, %v684
        %v737 = vpack.c.b16 %v687, %v685
        %v738 = vpack.c.b16 %v690, %v688
        %v739 = vpack.c.b16 %v691, %v689
        %v740 = vpack.c.b16 %v694, %v692
        %v741 = vpack.c.b16 %v695, %v693
        %v742 = vpack.c.b16 %v698, %v696
        %v743 = vpack.c.b16 %v699, %v697
        %v744 = vpack.c.b16 %v702, %v700
        %v745 = vpack.c.b16 %v703, %v701
        %v746 = vpack.c.b16 %v706, %v704
        %v747 = vpack.c.b16 %v707, %v705
        %v748 = vpack.c.b16 %v710, %v708
        %v749 = vpack.c.b16 %v711, %v709
        %v750 = vpack.c.b16 %v714, %v712
        %v751 = vpack.c.b16 %v715, %v713
        %v752 = vpack.c.b16 %v718, %v716
        %v753 = vpack.c.b16 %v719, %v717
        %v754 = vpack.c.b16 %v722, %v720
        %v755 = vpack.c.b16 %v723, %v721
        %788 = vmatprep.subr.bf16.mxu0 %v725
        %789 = vmatpush1.bf16.msra.mxu0 %v724
        %790 = vmatprep.subr.bf16.mxu0 %v727
        %791 = vmatpush1.bf16.msra.mxu0 %v726
        %792 = vmatprep.subr.bf16.mxu0 %v729
        %793 = vmatpush1.bf16.msra.mxu0 %v728
        %794 = vmatprep.subr.bf16.mxu0 %v731
        %795 = vmatpush1.bf16.msra.mxu0 %v730
        %796 = vmatprep.subr.bf16.mxu0 %v733
        %797 = vmatpush1.bf16.msra.mxu0 %v732
        %798 = vmatprep.subr.bf16.mxu0 %v735
        %799 = vmatpush1.bf16.msra.mxu0 %v734
        %800 = vmatprep.subr.bf16.mxu0 %v737
        %801 = vmatpush1.bf16.msra.mxu0 %v736
        %802 = vmatprep.subr.bf16.mxu0 %v739
        %803 = vmatpush1.bf16.msra.mxu0 %v738
        %804 = vmatprep.subr.bf16.mxu0 %v741
        %805 = vmatpush1.bf16.msra.mxu0 %v740
        %806 = vmatprep.subr.bf16.mxu0 %v743
        %807 = vmatpush1.bf16.msra.mxu0 %v742
        %808 = vmatprep.subr.bf16.mxu0 %v745
        %809 = vmatpush1.bf16.msra.mxu0 %v744
        %810 = vmatprep.subr.bf16.mxu0 %v747
        %811 = vmatpush1.bf16.msra.mxu0 %v746
        %812 = vmatprep.subr.bf16.mxu0 %v749
        %813 = vmatpush1.bf16.msra.mxu0 %v748
        %814 = vmatprep.subr.bf16.mxu0 %v751
        %815 = vmatpush1.bf16.msra.mxu0 %v750
        %816 = vmatprep.subr.bf16.mxu0 %v753
        %817 = vmatpush1.bf16.msra.mxu0 %v752
        %818 = vmatprep.subr.bf16.mxu0 %v755
        %819 = vmatpush1.bf16.msra.mxu0 %v754
        %820 = vmatprep.mubr.bf16.mxu0 %v569
        %821 = vmatmul.mubr.bf16.gmra.mrb[0].mxu0 %v568
        %v822 = vpop.f32.mrb[0].mxu0
        %v823 = vadd.f32 %v621, %v822
        %v824 = vpop.f32.mrb[0].mxu0
        %v825 = vadd.f32 %v625, %v824
        %v826 = vpop.f32.mrb[0].mxu0
        %v827 = vadd.f32 %v621, %v826
        %v828 = vpop.f32.mrb[0].mxu0
        %v829 = vadd.f32 %v625, %v828
        %830 = vmatprep.mubr.bf16.mxu0 %v571
        %831 = vmatmul.mubr.bf16.gmra.mrb[0].mxu0 %v570
        %v832 = vpop.f32.mrb[0].mxu0
        %v833 = vadd.f32 %v621, %v832
        %v834 = vpop.f32.mrb[0].mxu0
        %v835 = vadd.f32 %v625, %v834
        %v836 = vpop.f32.mrb[0].mxu0
        %v837 = vadd.f32 %v621, %v836
        %v838 = vpop.f32.mrb[0].mxu0
        %v839 = vadd.f32 %v625, %v838
        %840 = vmatprep.mubr.bf16.mxu0 %v573
        %841 = vmatmul.mubr.bf16.gmra.mrb[0].mxu0 %v572
        %v842 = vpop.f32.mrb[0].mxu0
        %v843 = vadd.f32 %v621, %v842
        %v844 = vpop.f32.mrb[0].mxu0
        %v845 = vadd.f32 %v625, %v844
        %v846 = vpop.f32.mrb[0].mxu0
        %v847 = vadd.f32 %v621, %v846
        %v848 = vpop.f32.mrb[0].mxu0
        %v849 = vadd.f32 %v625, %v848
        %850 = vmatprep.mubr.bf16.mxu0 %v575
        %851 = vmatmul.mubr.bf16.gmra.mrb[0].mxu0 %v574
        %v852 = vpop.f32.mrb[0].mxu0
        %v853 = vadd.f32 %v621, %v852
        %v854 = vpop.f32.mrb[0].mxu0
        %v855 = vadd.f32 %v625, %v854
        %v856 = vpop.f32.mrb[0].mxu0
        %v857 = vadd.f32 %v621, %v856
        %v858 = vpop.f32.mrb[0].mxu0
        %v859 = vadd.f32 %v625, %v858
        %860 = vmatprep.mubr.bf16.mxu0 %v577
        %861 = vmatmul.mubr.bf16.gmra.mrb[0].mxu0 %v576
        %v862 = vpop.f32.mrb[0].mxu0
        %v863 = vadd.f32 %v621, %v862
        %v864 = vpop.f32.mrb[0].mxu0
        %v865 = vadd.f32 %v625, %v864
        %v866 = vpop.f32.mrb[0].mxu0
        %v867 = vadd.f32 %v621, %v866
        %v868 = vpop.f32.mrb[0].mxu0
        %v869 = vadd.f32 %v625, %v868
        %870 = vmatprep.mubr.bf16.mxu0 %v579
        %871 = vmatmul.mubr.bf16.gmra.mrb[0].mxu0 %v578
        %v872 = vpop.f32.mrb[0].mxu0
        %v873 = vadd.f32 %v621, %v872
        %v874 = vpop.f32.mrb[0].mxu0
        %v875 = vadd.f32 %v625, %v874
        %v876 = vpop.f32.mrb[0].mxu0
        %v877 = vadd.f32 %v621, %v876
        %v878 = vpop.f32.mrb[0].mxu0
        %v879 = vadd.f32 %v625, %v878
        %880 = vmatprep.mubr.bf16.mxu0 %v581
        %881 = vmatmul.mubr.bf16.gmra.mrb[0].mxu0 %v580
        %v882 = vpop.f32.mrb[0].mxu0
        %v883 = vadd.f32 %v621, %v882
        %v884 = vpop.f32.mrb[0].mxu0
        %v885 = vadd.f32 %v625, %v884
        %v886 = vpop.f32.mrb[0].mxu0
        %v887 = vadd.f32 %v621, %v886
        %v888 = vpop.f32.mrb[0].mxu0
        %v889 = vadd.f32 %v625, %v888
        %890 = vmatprep.mubr.bf16.mxu0 %v583
        %891 = vmatmul.mubr.bf16.gmra.mrb[0].mxu0 %v582
        %v892 = vpop.f32.mrb[0].mxu0
        %v893 = vadd.f32 %v621, %v892
        %v894 = vpop.f32.mrb[0].mxu0
        %v895 = vadd.f32 %v625, %v894
        %v896 = vpop.f32.mrb[0].mxu0
        %v897 = vadd.f32 %v621, %v896
        %v898 = vpop.f32.mrb[0].mxu0
        %v899 = vadd.f32 %v625, %v898
        %900 = vdwg.mxu0
        %v901 = vmax.f32 %v823, 0.0
        %v902 = vmax.f32 %v825, 0.0
        %v903 = vmax.f32 %v827, 0.0
        %v904 = vmax.f32 %v829, 0.0
        %v905 = vmax.f32 %v833, 0.0
        %v906 = vmax.f32 %v835, 0.0
        %v907 = vmax.f32 %v837, 0.0
        %v908 = vmax.f32 %v839, 0.0
        %v909 = vmax.f32 %v843, 0.0
        %v910 = vmax.f32 %v845, 0.0
        %v911 = vmax.f32 %v847, 0.0
        %v912 = vmax.f32 %v849, 0.0
        %v913 = vmax.f32 %v853, 0.0
        %v914 = vmax.f32 %v855, 0.0
        %v915 = vmax.f32 %v857, 0.0
        %v916 = vmax.f32 %v859, 0.0
        %v917 = vmax.f32 %v863, 0.0
        %v918 = vmax.f32 %v865, 0.0
        %v919 = vmax.f32 %v867, 0.0
        %v920 = vmax.f32 %v869, 0.0
        %v921 = vmax.f32 %v873, 0.0
        %v922 = vmax.f32 %v875, 0.0
        %v923 = vmax.f32 %v877, 0.0
        %v924 = vmax.f32 %v879, 0.0
        %v925 = vmax.f32 %v883, 0.0
        %v926 = vmax.f32 %v885, 0.0
        %v927 = vmax.f32 %v887, 0.0
        %v928 = vmax.f32 %v889, 0.0
        %v929 = vmax.f32 %v893, 0.0
        %v930 = vmax.f32 %v895, 0.0
        %v931 = vmax.f32 %v897, 0.0
        %v932 = vmax.f32 %v899, 0.0
        %v933 = vpack.c.bf16 %v903, %v901
        %v934 = vpack.c.bf16 %v904, %v902
        %v935 = vpack.c.bf16 %v907, %v905
        %v936 = vpack.c.bf16 %v908, %v906
        %v937 = vpack.c.bf16 %v911, %v909
        %v938 = vpack.c.bf16 %v912, %v910
        %v939 = vpack.c.bf16 %v915, %v913
        %v940 = vpack.c.bf16 %v916, %v914
        %v941 = vpack.c.bf16 %v919, %v917
        %v942 = vpack.c.bf16 %v920, %v918
        %v943 = vpack.c.bf16 %v923, %v921
        %v944 = vpack.c.bf16 %v924, %v922
        %v945 = vpack.c.bf16 %v927, %v925
        %v946 = vpack.c.bf16 %v928, %v926
        %v947 = vpack.c.bf16 %v931, %v929
        %v948 = vpack.c.bf16 %v932, %v930
        %v949 = vld [vmem:[#allocation2] sm:$0xf]
        %v950 = vld [vmem:[#allocation2 + $0x4] sm:$0xf]
        %v951 = vld [vmem:[#allocation2 + $0x8] sm:$0xf]
        %v952 = vld [vmem:[#allocation2 + $0xc] sm:$0xf]
        %v953 = vld [vmem:[#allocation2 + $0x10] sm:$0xf]
        %v954 = vld [vmem:[#allocation2 + $0x14] sm:$0xf]
        %v955 = vld [vmem:[#allocation2 + $0x18] sm:$0xf]
        %v956 = vld [vmem:[#allocation2 + $0x1c] sm:$0xf]
        %v957 = vld [vmem:[#allocation2 + $0x20] sm:$0xf]
        %v958 = vld [vmem:[#allocation2 + $0x24] sm:$0xf]
        %v959 = vld [vmem:[#allocation2 + $0x28] sm:$0xf]
        %v960 = vld [vmem:[#allocation2 + $0x2c] sm:$0xf]
        %v961 = vld [vmem:[#allocation2 + $0x30] sm:$0xf]
        %v962 = vld [vmem:[#allocation2 + $0x34] sm:$0xf]
        %v963 = vld [vmem:[#allocation2 + $0x38] sm:$0xf]
        %v964 = vld [vmem:[#allocation2 + $0x3c] sm:$0xf]
        %v965 = vld [vmem:[#allocation2 + $0x40] sm:$0xf]
        %v966 = vld [vmem:[#allocation2 + $0x44] sm:$0xf]
        %v967 = vld [vmem:[#allocation2 + $0x48] sm:$0xf]
        %v968 = vld [vmem:[#allocation2 + $0x4c] sm:$0xf]
        %v969 = vld [vmem:[#allocation2 + $0x50] sm:$0xf]
        %v970 = vld [vmem:[#allocation2 + $0x54] sm:$0xf]
        %v971 = vld [vmem:[#allocation2 + $0x58] sm:$0xf]
        %v972 = vld [vmem:[#allocation2 + $0x5c] sm:$0xf]
        %v973 = vld [vmem:[#allocation2 + $0x60] sm:$0xf]
        %v974 = vld [vmem:[#allocation2 + $0x64] sm:$0xf]
        %v975 = vld [vmem:[#allocation2 + $0x68] sm:$0xf]
        %v976 = vld [vmem:[#allocation2 + $0x6c] sm:$0xf]
        %v977 = vld [vmem:[#allocation2 + $0x70] sm:$0xf]
        %v978 = vld [vmem:[#allocation2 + $0x74] sm:$0xf]
        %v979 = vld [vmem:[#allocation2 + $0x78] sm:$0xf]
        %v980 = vld [vmem:[#allocation2 + $0x7c] sm:$0xf]
        %v981 = vld [vmem:[%s6] sm:$0x1]
        %v983 = vlaneseq
        %v984 = vshrl.u32 %v983, 7
        %v985 = vsub.s32 0, %v984
        %v986 = vrot.slane %v981, %v985
        %v1020 = vunpack.c.l.b16 %v949
        %v1021 = vunpack.c.l.b16 %v950
        %v1022 = vunpack.c.l.b16 %v951
        %v1023 = vunpack.c.l.b16 %v952
        %v1024 = vunpack.c.l.b16 %v953
        %v1025 = vunpack.c.l.b16 %v954
        %v1026 = vunpack.c.l.b16 %v955
        %v1027 = vunpack.c.l.b16 %v956
        %v1028 = vunpack.c.l.b16 %v957
        %v1029 = vunpack.c.l.b16 %v958
        %v1030 = vunpack.c.l.b16 %v959
        %v1031 = vunpack.c.l.b16 %v960
        %v1032 = vunpack.c.l.b16 %v961
        %v1033 = vunpack.c.l.b16 %v962
        %v1034 = vunpack.c.l.b16 %v963
        %v1035 = vunpack.c.l.b16 %v964
        %v1036 = vunpack.c.l.b16 %v965
        %v1037 = vunpack.c.l.b16 %v966
        %v1038 = vunpack.c.l.b16 %v967
        %v1039 = vunpack.c.l.b16 %v968
        %v1040 = vunpack.c.l.b16 %v969
        %v1041 = vunpack.c.l.b16 %v970
        %v1042 = vunpack.c.l.b16 %v971
        %v1043 = vunpack.c.l.b16 %v972
        %v1044 = vunpack.c.l.b16 %v973
        %v1045 = vunpack.c.l.b16 %v974
        %v1046 = vunpack.c.l.b16 %v975
        %v1047 = vunpack.c.l.b16 %v976
        %v1048 = vunpack.c.l.b16 %v977
        %v1049 = vunpack.c.l.b16 %v978
        %v1050 = vunpack.c.l.b16 %v979
        %v1051 = vunpack.c.l.b16 %v980
        %v1052 = vpack.c.b16 %v1021, %v1020
        %v1053 = vpack.c.b16 %v1023, %v1022
        %v1054 = vpack.c.b16 %v1025, %v1024
        %v1055 = vpack.c.b16 %v1027, %v1026
        %v1056 = vpack.c.b16 %v1029, %v1028
        %v1057 = vpack.c.b16 %v1031, %v1030
        %v1058 = vpack.c.b16 %v1033, %v1032
        %v1059 = vpack.c.b16 %v1035, %v1034
        %v1060 = vpack.c.b16 %v1037, %v1036
        %v1061 = vpack.c.b16 %v1039, %v1038
        %v1062 = vpack.c.b16 %v1041, %v1040
        %v1063 = vpack.c.b16 %v1043, %v1042
        %v1064 = vpack.c.b16 %v1045, %v1044
        %v1065 = vpack.c.b16 %v1047, %v1046
        %v1066 = vpack.c.b16 %v1049, %v1048
        %v1067 = vpack.c.b16 %v1051, %v1050
        %1084 = vmatprep.subr.bf16.mxu0 0
        %1085 = vmatpush1.bf16.msra.mxu0 %v1052
        %1086 = vmatprep.subr.bf16.mxu0 0
        %1087 = vmatpush1.bf16.msra.mxu0 %v1053
        %1088 = vmatprep.subr.bf16.mxu0 0
        %1089 = vmatpush1.bf16.msra.mxu0 %v1054
        %1090 = vmatprep.subr.bf16.mxu0 0
        %1091 = vmatpush1.bf16.msra.mxu0 %v1055
        %1092 = vmatprep.subr.bf16.mxu0 0
        %1093 = vmatpush1.bf16.msra.mxu0 %v1056
        %1094 = vmatprep.subr.bf16.mxu0 0
        %1095 = vmatpush1.bf16.msra.mxu0 %v1057
        %1096 = vmatprep.subr.bf16.mxu0 0
        %1097 = vmatpush1.bf16.msra.mxu0 %v1058
        %1098 = vmatprep.subr.bf16.mxu0 0
        %1099 = vmatpush1.bf16.msra.mxu0 %v1059
        %1100 = vmatprep.subr.bf16.mxu0 0
        %1101 = vmatpush1.bf16.msra.mxu0 %v1060
        %1102 = vmatprep.subr.bf16.mxu0 0
        %1103 = vmatpush1.bf16.msra.mxu0 %v1061
        %1104 = vmatprep.subr.bf16.mxu0 0
        %1105 = vmatpush1.bf16.msra.mxu0 %v1062
        %1106 = vmatprep.subr.bf16.mxu0 0
        %1107 = vmatpush1.bf16.msra.mxu0 %v1063
        %1108 = vmatprep.subr.bf16.mxu0 0
        %1109 = vmatpush1.bf16.msra.mxu0 %v1064
        %1110 = vmatprep.subr.bf16.mxu0 0
        %1111 = vmatpush1.bf16.msra.mxu0 %v1065
        %1112 = vmatprep.subr.bf16.mxu0 0
        %1113 = vmatpush1.bf16.msra.mxu0 %v1066
        %1114 = vmatprep.subr.bf16.mxu0 0
        %1115 = vmatpush1.bf16.msra.mxu0 %v1067
        %1116 = vmatprep.mubr.bf16.mxu0 %v934
        %1117 = vmatmul.mubr.bf16.gmra.mrb[0].mxu0 %v933
        %v1118 = vpop.f32.mrb[0].mxu0
        %v1119 = vadd.f32 %v986, %v1118
        %v1120 = vpop.f32.mrb[0].mxu0
        %v1121 = vpop.f32.mrb[0].mxu0
        %v1122 = vadd.f32 %v986, %v1121
        %v1123 = vpop.f32.mrb[0].mxu0
        %1124 = vmatprep.mubr.bf16.mxu0 %v936
        %1125 = vmatmul.mubr.bf16.gmra.mrb[0].mxu0 %v935
        %v1126 = vpop.f32.mrb[0].mxu0
        %v1127 = vadd.f32 %v986, %v1126
        %v1128 = vpop.f32.mrb[0].mxu0
        %v1129 = vpop.f32.mrb[0].mxu0
        %v1130 = vadd.f32 %v986, %v1129
        %v1131 = vpop.f32.mrb[0].mxu0
        %1132 = vmatprep.mubr.bf16.mxu0 %v938
        %1133 = vmatmul.mubr.bf16.gmra.mrb[0].mxu0 %v937
        %v1134 = vpop.f32.mrb[0].mxu0
        %v1135 = vadd.f32 %v986, %v1134
        %v1136 = vpop.f32.mrb[0].mxu0
        %v1137 = vpop.f32.mrb[0].mxu0
        %v1138 = vadd.f32 %v986, %v1137
        %v1139 = vpop.f32.mrb[0].mxu0
        %1140 = vmatprep.mubr.bf16.mxu0 %v940
        %1141 = vmatmul.mubr.bf16.gmra.mrb[0].mxu0 %v939
        %v1142 = vpop.f32.mrb[0].mxu0
        %v1143 = vadd.f32 %v986, %v1142
        %v1144 = vpop.f32.mrb[0].mxu0
        %v1145 = vpop.f32.mrb[0].mxu0
        %v1146 = vadd.f32 %v986, %v1145
        %v1147 = vpop.f32.mrb[0].mxu0
        %1148 = vmatprep.mubr.bf16.mxu0 %v942
        %1149 = vmatmul.mubr.bf16.gmra.mrb[0].mxu0 %v941
        %v1150 = vpop.f32.mrb[0].mxu0
        %v1151 = vadd.f32 %v986, %v1150
        %v1152 = vpop.f32.mrb[0].mxu0
        %v1153 = vpop.f32.mrb[0].mxu0
        %v1154 = vadd.f32 %v986, %v1153
        %v1155 = vpop.f32.mrb[0].mxu0
        %1156 = vmatprep.mubr.bf16.mxu0 %v944
        %1157 = vmatmul.mubr.bf16.gmra.mrb[0].mxu0 %v943
        %v1158 = vpop.f32.mrb[0].mxu0
        %v1159 = vadd.f32 %v986, %v1158
        %v1160 = vpop.f32.mrb[0].mxu0
        %v1161 = vpop.f32.mrb[0].mxu0
        %v1162 = vadd.f32 %v986, %v1161
        %v1163 = vpop.f32.mrb[0].mxu0
        %1164 = vmatprep.mubr.bf16.mxu0 %v946
        %1165 = vmatmul.mubr.bf16.gmra.mrb[0].mxu0 %v945
        %v1166 = vpop.f32.mrb[0].mxu0
        %v1167 = vadd.f32 %v986, %v1166
        %v1168 = vpop.f32.mrb[0].mxu0
        %v1169 = vpop.f32.mrb[0].mxu0
        %v1170 = vadd.f32 %v986, %v1169
        %v1171 = vpop.f32.mrb[0].mxu0
        %1172 = vmatprep.mubr.bf16.mxu0 %v948
        %1173 = vmatmul.mubr.bf16.gmra.mrb[0].mxu0 %v947
        %v1174 = vpop.f32.mrb[0].mxu0
        %v1175 = vadd.f32 %v986, %v1174
        %v1176 = vpop.f32.mrb[0].mxu0
        %v1177 = vpop.f32.mrb[0].mxu0
        %v1178 = vadd.f32 %v986, %v1177
        %v1179 = vpop.f32.mrb[0].mxu0
        %1180 = vdwg.mxu0
        %v1181 = vpack.c.bf16 %v1122, %v1119
        %v1182 = vpack.c.bf16 %v1130, %v1127
        %v1183 = vpack.c.bf16 %v1138, %v1135
        %v1184 = vpack.c.bf16 %v1146, %v1143
        %v1185 = vpack.c.bf16 %v1154, %v1151
        %v1186 = vpack.c.bf16 %v1162, %v1159
        %v1187 = vpack.c.bf16 %v1170, %v1167
        %v1188 = vpack.c.bf16 %v1178, %v1175
        %v1197 = vunpack.c.l.b16 %v1181
        %v1198 = vunpack.c.h.b16 %v1181
        %v1199 = vunpack.c.l.b16 %v1182
        %v1200 = vunpack.c.h.b16 %v1182
        %v1201 = vunpack.c.l.b16 %v1183
        %v1202 = vunpack.c.h.b16 %v1183
        %v1203 = vunpack.c.l.b16 %v1184
        %v1204 = vunpack.c.h.b16 %v1184
        %v1205 = vunpack.c.l.b16 %v1185
        %v1206 = vunpack.c.h.b16 %v1185
        %v1207 = vunpack.c.l.b16 %v1186
        %v1208 = vunpack.c.h.b16 %v1186
        %v1209 = vunpack.c.l.b16 %v1187
        %v1210 = vunpack.c.h.b16 %v1187
        %v1211 = vunpack.c.l.b16 %v1188
        %v1212 = vunpack.c.h.b16 %v1188
        %v1213 = vpack.c.b16 %v1197, %v1197
        %v1214 = vpack.c.b16 %v1198, %v1198
        %v1215 = vpack.c.b16 %v1199, %v1199
        %v1216 = vpack.c.b16 %v1200, %v1200
        %v1217 = vpack.c.b16 %v1201, %v1201
        %v1218 = vpack.c.b16 %v1202, %v1202
        %v1219 = vpack.c.b16 %v1203, %v1203
        %v1220 = vpack.c.b16 %v1204, %v1204
        %v1221 = vpack.c.b16 %v1205, %v1205
        %v1222 = vpack.c.b16 %v1206, %v1206
        %v1223 = vpack.c.b16 %v1207, %v1207
        %v1224 = vpack.c.b16 %v1208, %v1208
        %v1225 = vpack.c.b16 %v1209, %v1209
        %v1226 = vpack.c.b16 %v1210, %v1210
        %v1227 = vpack.c.b16 %v1211, %v1211
        %v1228 = vpack.c.b16 %v1212, %v1212
        %1245 = vst [vmem:[%s287] sm:$0xf] %v1213
        %1246 = vst [vmem:[%s287 + $0x4] sm:$0xf] %v1214
        %1247 = vst [vmem:[%s287 + $0x8] sm:$0xf] %v1215
        %1248 = vst [vmem:[%s287 + $0xc] sm:$0xf] %v1216
        %1249 = vst [vmem:[%s287 + $0x10] sm:$0xf] %v1217
        %1250 = vst [vmem:[%s287 + $0x14] sm:$0xf] %v1218
        %1251 = vst [vmem:[%s287 + $0x18] sm:$0xf] %v1219
        %1252 = vst [vmem:[%s287 + $0x1c] sm:$0xf] %v1220
        %1253 = vst [vmem:[%s287 + $0x20] sm:$0xf] %v1221
        %1254 = vst [vmem:[%s287 + $0x24] sm:$0xf] %v1222
        %1255 = vst [vmem:[%s287 + $0x28] sm:$0xf] %v1223
        %1256 = vst [vmem:[%s287 + $0x2c] sm:$0xf] %v1224
        %1257 = vst [vmem:[%s287 + $0x30] sm:$0xf] %v1225
        %1258 = vst [vmem:[%s287 + $0x34] sm:$0xf] %v1226
        %1259 = vst [vmem:[%s287 + $0x38] sm:$0xf] %v1227
        %1260 = vst [vmem:[%s287 + $0x3c] sm:$0xf] %v1228
        %s1261 = sand.u32 %s182, 1
        %s1262 = scalar_lea.sflag [#allocation4], %s1261
        %s1263 = sand.u32 %s182, 1
        %s1264 = smul.addr %s1263, 64
        %s1265 = scalar_lea.vmem [#allocation5], %s1264
        // Predicated region
        $region53: #{tpu_custom_call.1} parent=47 // pred_check
          %p1266 = pneg %p192
        $region54: #{tpu_custom_call.1} parent=47 // pred_check_branch
          %1268 = sbr.rel (%p1266) target = $region56
        $region55: #{tpu_custom_call.1} parent=47 // pred_region
          %s1269 = smul.u32 16, %s22
          %s1271 = ssub.s32 1024, 1024
          %1272 = vsyncadd %s1262, %s1271
          %s1273 = smul.addr %s1269, 64
          %s1274 = scalar_lea.hbm %s7, %s1273
          %s1275 = sshll.u32 %s1265, 4
          %s1276 = int_to_ptr.vmem [resolvable:$true] %s1275
          %1281 = dma.vmem_to_hbm [thread:$0]  %s1276, 1024, %s1274, %s1262, 64, 64, 4
        $region56: #{tpu_custom_call.1} parent=47 // pred_fallthru
          _
      $region48: #{tpu_custom_call.1} parent=5 // pred_fallthru
        _
      %p1282 = scmp.le.s32.totalorder 2, %s17
      // Predicated region
      $region57: #{tpu_custom_call.1} parent=5 // pred_check
        %p1283 = pneg %p1282
      $region58: #{tpu_custom_call.1} parent=5 // pred_check_branch
        %1285 = sbr.rel (%p1283) target = $region60
      $region59: #{tpu_custom_call.1} parent=5 // pred_region
        %s1286 = ssub.s32 %s17, 2
        // Predicated region
        $region61: #{tpu_custom_call.1} parent=59 // pred_check
          %p1287 = pneg %p198
        $region62: #{tpu_custom_call.1} parent=59 // pred_check_branch
          %1289 = sbr.rel (%p1287) target = $region64
        $region63: #{tpu_custom_call.1} parent=59 // pred_region
          %s1290 = sand.u32 %s183, 1
          %s1291 = scalar_lea.sflag [#allocation4], %s1290
          %s1292 = sand.u32 %s183, 1
          %s1293 = smul.addr %s1292, 64
          %s1294 = scalar_lea.vmem [#allocation5], %s1293
          %1295 = dma.done %s1291, 1024
        $region64: #{tpu_custom_call.1} parent=59 // pred_fallthru
          _
      $region60: #{tpu_custom_call.1} parent=5 // pred_fallthru
        _
    $region6: #{tpu_custom_call.1} parent=1 // loop_footer
      %s21 = sadd.s32 1, %s17
    $region7: #{tpu_custom_call.1} parent=1 // loop_footer_branch
      %16 = sbr.rel target = $region3
    $region8: #{tpu_custom_call.1} parent=1 // loop_exit
      _
    %1296 = vsyncpa [#allocation3], 1
    %s1297 = scalar_lea.sflag [#allocation3], 1
    %1298 = vsyncpa %s1297, 1
    %1299 = vsyncpa [#allocation4], 1
    %s1300 = scalar_lea.sflag [#allocation4], 1
    %1301 = vsyncpa %s1300, 1

</llo_original>
